<compile_context>
chip_gen: v7x
topology: tpu7x:2x2x1
jax: 0.10.0
libtpu: 0.0.40
codegen_flags: <defaults>
</compile_context>

<pallas_src>
import functools

import jax
import jax.numpy as jnp
from jax.experimental import pallas as pl
from jax.experimental.pallas import tpu as pltpu


def _focal_kernel(x_ref, t_ref, a_ref, out_ref, *, gamma, hw, tn):
    """Process one (1, C, TN) logits tile: classes on sublanes, positions on lanes."""
    x = x_ref[0].astype(jnp.float32)          # (C, TN) logits
    t = t_ref[0]                              # (1, TN) int32 targets
    alpha = a_ref[...].astype(jnp.float32)    # (C, 1)  per-class weights
    c = x.shape[0]

    # numerically stable log_softmax over the class (sublane) axis
    m = jnp.max(x, axis=0, keepdims=True)                         # (1, TN)
    s = x - m
    lse = jnp.log(jnp.sum(jnp.exp(s), axis=0, keepdims=True))     # (1, TN)

    # gather logp / alpha at the target class via a sublane one-hot
    cls = jax.lax.broadcasted_iota(jnp.int32, (c, tn), 0)         # (C, TN)
    onehot = (cls == t).astype(jnp.float32)                       # (C, TN)
    s_t = jnp.sum(s * onehot, axis=0, keepdims=True)              # x[target] - m
    logpt = s_t - lse                                             # (1, TN)
    pt = jnp.exp(logpt)
    at = jnp.sum(alpha * onehot, axis=0, keepdims=True)           # (1, TN)
    logpt = logpt * at

    # (1 - pt) ** gamma: integer gamma becomes plain VALU multiplies (no pow
    # -> no extra log/exp on the single EUP slot that already does the softmax).
    u = 1.0 - pt
    if float(gamma).is_integer() and gamma >= 0:
        gi = int(gamma)
        if gi == 0:
            mod = jnp.ones_like(u)
        else:
            mod = u
            for _ in range(gi - 1):
                mod = mod * u
    else:
        mod = u ** jnp.float32(gamma)

    loss = -mod * logpt                                           # (1, TN)

    # zero out padded lanes of a ragged final tile (so the wrapper can jnp.sum)
    if hw % tn != 0:
        pos = pl.program_id(1) * tn + jax.lax.broadcasted_iota(jnp.int32, (1, tn), 1)
        loss = jnp.where(pos < hw, loss, 0.0)

    out_ref[0] = loss


def focal_loss_pallas(logits_nchw, target_nhw, alpha=None, gamma=0.0,
                      size_average=True, tn=None):
    """logits_nchw: (N, C, H, W); target_nhw: (N, H, W) int; alpha: None | scalar |
    per-class sequence (mirrors the PyTorch module). Returns the scalar focal loss."""
    n, c, h, w = logits_nchw.shape
    hw = h * w

    # native layout -- pure reshapes, no HBM transpose / extra copy
    x = logits_nchw.reshape(n, c, hw)
    t = target_nhw.reshape(n, 1, hw).astype(jnp.int32)

    # alpha handling, mirroring the module's __init__ branches
    if alpha is None:
        a = jnp.ones((c,), jnp.float32)
    elif isinstance(alpha, (float, int)):
        a = jnp.array([float(alpha), 1.0 - float(alpha)], jnp.float32)
    else:
        a = jnp.asarray(alpha, jnp.float32)
    assert a.shape == (c,), "alpha must provide one weight per class"
    a = a.reshape(c, 1)

    # lane-tile size: as large as comfortably fits double-buffered VMEM
    if tn is None:
        budget = 12 << 20                              # conservative on v5e/v6e/v7x
        tn = (budget // (2 * 4 * (c + 2)) // 128) * 128
        tn = max(128, min(tn, 4096))
    if hw <= tn:
        tn = hw                                        # single full-width lane tile
    grid_t = pl.cdiv(hw, tn)
    hw_pad = grid_t * tn

    kernel = functools.partial(_focal_kernel, gamma=float(gamma), hw=hw, tn=tn)

    out = pl.pallas_call(
        kernel,
        out_shape=jax.ShapeDtypeStruct((n, 1, hw_pad), jnp.float32),
        grid_spec=pltpu.PrefetchScalarGridSpec(
            num_scalar_prefetch=0,
            grid=(n, grid_t),
            in_specs=[
                pl.BlockSpec((1, c, tn), lambda i, j: (i, 0, j)),   # logits tile
                pl.BlockSpec((1, 1, tn), lambda i, j: (i, 0, j)),   # target tile
                pl.BlockSpec((c, 1), lambda i, j: (0, 0)),          # alpha (resident)
            ],
            out_specs=pl.BlockSpec((1, 1, tn), lambda i, j: (i, 0, j)),
        ),
        compiler_params=pltpu.CompilerParams(
            dimension_semantics=("parallel", "parallel"),
            vmem_limit_bytes=32 << 20),
    )(x, t, a)

    total = jnp.sum(out)            # padded lanes were zeroed in-kernel
    if size_average:
        return total / jnp.float32(n * hw)
    return total


def focal_loss_ref(logits_nchw, target_nhw, alpha_vec, gamma=0.0):
    n, c, h, w = logits_nchw.shape
    x = logits_nchw.reshape(n, c, h * w).transpose(0, 2, 1).reshape(-1, c)
    t = target_nhw.reshape(-1).astype(jnp.int32)
    logp = jax.nn.log_softmax(x.astype(jnp.float32), axis=1)
    logpt = jnp.take_along_axis(logp, t[:, None], axis=1)[:, 0]
    pt = jnp.exp(logpt)
    at = alpha_vec.astype(jnp.float32)[t]
    logpt = logpt * at
    loss = -1.0 * (1.0 - pt) ** gamma * logpt
    return jnp.mean(loss)


if __name__ == "__main__":
    key = jax.random.PRNGKey(0)
    k1, k2, k3, k4 = jax.random.split(key, 4)

    # Case 1: shapes implied by the module -- N=2, C=4, 16x16 spatial,
    # gamma=2, per-class alpha list.
    N, C, H, W = 2, 4, 16, 16
    gamma = 2.0
    alpha = [0.1, 0.2, 0.3, 0.4]
    x = jax.random.normal(k1, (N, C, H, W), dtype=jnp.float32)
    tgt = jax.random.randint(k2, (N, H, W), 0, C, dtype=jnp.int32)

    loss = jax.block_until_ready(focal_loss_pallas(x, tgt, alpha, gamma=gamma))
    ref = focal_loss_ref(x, tgt, jnp.asarray(alpha, jnp.float32), gamma=gamma)
    assert jnp.allclose(loss, ref, rtol=1e-5, atol=1e-6), (loss, ref)

    # Case 2: ragged spatial extent with a forced small lane tile to exercise
    # the cdiv grid + in-kernel lane mask; scalar alpha branch; gamma=0.
    N2, C2, H2, W2 = 2, 2, 10, 20            # HW = 200, tn = 128 -> ragged tile
    x2 = jax.random.normal(k3, (N2, C2, H2, W2), dtype=jnp.float32)
    t2 = jax.random.randint(k4, (N2, H2, W2), 0, C2, dtype=jnp.int32)
    loss2 = jax.block_until_ready(
        focal_loss_pallas(x2, t2, 0.25, gamma=0.0, tn=128))
    ref2 = focal_loss_ref(x2, t2, jnp.array([0.25, 0.75], jnp.float32), gamma=0.0)
    assert jnp.allclose(loss2, ref2, rtol=1e-5, atol=1e-6), (loss2, ref2)

    print("KERNEL_OK")
</pallas_src>

<mosaic_0001>
module attributes {stable_mosaic.version = 11 : i64} {
  func.func @_focal_kernel(%arg0: i32, %arg1: i32, %arg2: memref<1x4x256xf32, #tpu.memory_space<vmem>>, %arg3: memref<1x1x256xi32, #tpu.memory_space<vmem>>, %arg4: memref<4x1xf32, #tpu.memory_space<vmem>>, %arg5: memref<1x1x256xf32, #tpu.memory_space<vmem>>) attributes {dimension_semantics = [#tpu.dimension_semantics<parallel>, #tpu.dimension_semantics<parallel>], iteration_bounds = array<i64: 2, 1>, scalar_prefetch = 0 : i64, scratch_operands = 0 : i64, tpu.core_type = #tpu.core_type<tc>, window_params = [{transform_indices = @transform_0, window_bounds = array<i64: 1, 4, 256>}, {transform_indices = @transform_1, window_bounds = array<i64: 1, 1, 256>}, {pipeline_mode = #tpu.pipeline_mode<synchronous>, transform_indices = @transform_2, window_bounds = array<i64: 4, 1>}, {transform_indices = @transform_3, window_bounds = array<i64: 1, 1, 256>}]} {
    %c0 = arith.constant 0 : index
    %c0_0 = arith.constant 0 : index
    %c0_1 = arith.constant 0 : index
    %0 = vector.load %arg2[%c0, %c0_0, %c0_1] : memref<1x4x256xf32, #tpu.memory_space<vmem>>, vector<1x4x256xf32>
    %1 = vector.shape_cast %0 : vector<1x4x256xf32> to vector<4x256xf32>
    %c0_2 = arith.constant 0 : index
    %c0_3 = arith.constant 0 : index
    %c0_4 = arith.constant 0 : index
    %2 = vector.load %arg3[%c0_2, %c0_3, %c0_4] : memref<1x1x256xi32, #tpu.memory_space<vmem>>, vector<1x1x256xi32>
    %3 = vector.shape_cast %2 : vector<1x1x256xi32> to vector<1x256xi32>
    %c0_5 = arith.constant 0 : index
    %c0_6 = arith.constant 0 : index
    %4 = vector.load %arg4[%c0_5, %c0_6] : memref<4x1xf32, #tpu.memory_space<vmem>>, vector<4x1xf32>
    %cst = arith.constant dense<0xFF800000> : vector<256xf32>
    %5 = vector.multi_reduction <maximumf>, %1, %cst [0] : vector<4x256xf32> to vector<256xf32>
    %6 = vector.shape_cast %5 : vector<256xf32> to vector<1x256xf32>
    %7 = vector.broadcast %6 : vector<1x256xf32> to vector<4x256xf32>
    %8 = arith.subf %1, %7 : vector<4x256xf32>
    %9 = math.exp %8 : vector<4x256xf32>
    %cst_7 = arith.constant dense<0.000000e+00> : vector<256xf32>
    %10 = vector.multi_reduction <add>, %9, %cst_7 [0] : vector<4x256xf32> to vector<256xf32>
    %11 = vector.shape_cast %10 : vector<256xf32> to vector<1x256xf32>
    %12 = math.log %11 : vector<1x256xf32>
    %13 = tpu.iota {dimensions = array<i32: 0>} : vector<4x256xi32>
    %14 = vector.broadcast %3 : vector<1x256xi32> to vector<4x256xi32>
    %15 = arith.cmpi eq, %13, %14 : vector<4x256xi32>
    %16 = arith.extui %15 : vector<4x256xi1> to vector<4x256xi32>
    %17 = arith.sitofp %16 : vector<4x256xi32> to vector<4x256xf32>
    %18 = arith.mulf %8, %17 : vector<4x256xf32>
    %cst_8 = arith.constant dense<0.000000e+00> : vector<256xf32>
    %19 = vector.multi_reduction <add>, %18, %cst_8 [0] : vector<4x256xf32> to vector<256xf32>
    %20 = vector.shape_cast %19 : vector<256xf32> to vector<1x256xf32>
    %21 = arith.subf %20, %12 : vector<1x256xf32>
    %22 = math.exp %21 : vector<1x256xf32>
    %23 = vector.broadcast %4 : vector<4x1xf32> to vector<4x256xf32>
    %24 = arith.mulf %23, %17 : vector<4x256xf32>
    %cst_9 = arith.constant dense<0.000000e+00> : vector<256xf32>
    %25 = vector.multi_reduction <add>, %24, %cst_9 [0] : vector<4x256xf32> to vector<256xf32>
    %26 = vector.shape_cast %25 : vector<256xf32> to vector<1x256xf32>
    %27 = arith.mulf %21, %26 : vector<1x256xf32>
    %cst_10 = arith.constant 1.000000e+00 : f32
    %28 = vector.broadcast %cst_10 : f32 to vector<1x256xf32>
    %29 = arith.subf %28, %22 : vector<1x256xf32>
    %30 = arith.mulf %29, %29 : vector<1x256xf32>
    %cst_11 = arith.constant 0.000000e+00 : f32
    %31 = vector.broadcast %cst_11 : f32 to vector<1x256xf32>
    %32 = arith.subf %31, %30 : vector<1x256xf32>
    %33 = arith.mulf %32, %27 : vector<1x256xf32>
    %c0_12 = arith.constant 0 : index
    %c0_13 = arith.constant 0 : index
    %c0_14 = arith.constant 0 : index
    %34 = vector.load %arg5[%c0_12, %c0_13, %c0_14] : memref<1x1x256xf32, #tpu.memory_space<vmem>>, vector<1x1x256xf32>
    %35 = vector.shape_cast %34 : vector<1x1x256xf32> to vector<1x256xf32>
    %36 = vector.shape_cast %33 : vector<1x256xf32> to vector<1x1x256xf32>
    tpu.vector_store %arg5[%c0_12, %c0_13, %c0_14], %36 {strides = array<i32>} : memref<1x1x256xf32, #tpu.memory_space<vmem>>, vector<1x1x256xf32>,
    return
  }
  func.func @transform_0(%arg0: i32, %arg1: i32) -> (i32, i32, i32) {
    %c0_i32 = arith.constant 0 : i32
    %c0_i32_0 = arith.constant 0 : i32
    return %arg0, %c0_i32, %arg1 : i32, i32, i32
  }
  func.func @transform_1(%arg0: i32, %arg1: i32) -> (i32, i32, i32) {
    %c0_i32 = arith.constant 0 : i32
    %c0_i32_0 = arith.constant 0 : i32
    return %arg0, %c0_i32, %arg1 : i32, i32, i32
  }
  func.func @transform_2(%arg0: i32, %arg1: i32) -> (i32, i32) {
    %c0_i32 = arith.constant 0 : i32
    %c0_i32_0 = arith.constant 0 : i32
    %c0_i32_1 = arith.constant 0 : i32
    return %c0_i32, %c0_i32_0 : i32, i32
  }
  func.func @transform_3(%arg0: i32, %arg1: i32) -> (i32, i32, i32) {
    %c0_i32 = arith.constant 0 : i32
    %c0_i32_0 = arith.constant 0 : i32
    return %arg0, %c0_i32, %arg1 : i32, i32, i32
  }
}

</mosaic_0001>

<llo_original>
// kernel: tpu_custom_call.1
$region0: #{tpu_custom_call.1}
  #allocation0 [shape = 'u32[]', space=smem, size = 0x4, offset = 0x4, fixed_abs, tag = 'smem constant byte address 0x4 - core index']
  #allocation1 [shape = 'u32[144,128]{1,0:T(1,128)}', space=vmem, size = 0x12000, scoped, tag = 'internal scratch']
  %s0 = inlined_call_operand.hbm [shape: f32[2,4,256], index: 0, kind: input, shape index: {}]
  %s1 = inlined_call_operand.vmem [shape: s32[2,1,256], index: 1, kind: input, shape index: {}]
  %s2 = inlined_call_operand.vmem [shape: f32[4,1], index: 2, kind: input, shape index: {}]
  %s3 = inlined_call_operand.hbm [shape: f32[2,1,256], index: 3, kind: output, shape index: {}]
  %s4 = sld [smem:[#allocation0]]
  $region49: #{tpu_custom_call.1} parent=0
    _
  %s6 = ssub.s32 1, %s4
  %s7 = scalar_select 0, %s6, %s4
  $region1: #{tpu_custom_call.1} parent=0
    #allocation2 [shape = 'u8[8192]{0}', space=vmem, size = 0x2000, scoped, tag = 'input window, operand 0']
    #allocation3 [shape = 's32[2]{0}', space=sflag, size = 0x8, scoped, tag = 'scoped memory for tpu_custom_call.1']
    #allocation4 [shape = 's32[2]{0}', space=sflag, size = 0x8, scoped, tag = 'scoped memory for tpu_custom_call.1']
    #allocation5 [shape = 'u8[2048]{0}', space=vmem, size = 0x800, scoped, tag = 'output window, operand 0']
    %8 = vsyncpa [#allocation3], 0
    %s9 = scalar_lea.sflag [#allocation3], 1
    %10 = vsyncpa %s9, 0
    %11 = vsyncpa [#allocation4], 0
    %s12 = scalar_lea.sflag [#allocation4], 1
    %13 = vsyncpa %s12, 0
    loop: start=0, step=1, limit=4
    $region2: #{tpu_custom_call.1} parent=1 // loop_pre_header
      _
    $region3: #{tpu_custom_call.1} parent=1 // loop_header
      %s15 = sphi 0, %s19
      %p16 = scmp.ge.s32.totalorder %s15, 4
      %s22 = sphi 0, %s34
      %s23 = sphi 0, %s30
      %s24 = sphi 0, %s22
      %s25 = sphi 0, %s23
      %s26 = sphi 0, %s24
      %s27 = sphi 0, %s25
      %s39 = sphi 0, %s41
      %s42 = sphi 0, %s39
      %s43 = sphi 0, %s42
      %s59 = sphi 0, %s43
      %s67 = sphi 0, %s69
      %s70 = sphi 0, %s67
      %s71 = sphi 0, %s70
      %s87 = sphi 0, %s71
      %s91 = sphi 0, %s91
      %s93 = sphi 0, %s91
      %s94 = sphi 0, %s93
      %s108 = sphi 0, %s94
      %s116 = sphi 0, %s118
      %s119 = sphi 0, %s116
      %s120 = sphi 0, %s119
      %s136 = sphi 0, %s120
    $region4: #{tpu_custom_call.1} parent=1 // loop_header_branch
      %18 = sbr.rel (%p16) target = $region8
    $region5: #{tpu_custom_call.1} parent=1 // loop_body
      %s20 = ssub.s32 %s15, 1
      %s21 = ssub.s32 %s15, 2
      %s28 = sadd.s32 1, %s23
      %p29 = scmp.ge.s32.totalorder %s28, 1
      %s30 = scalar_select %p29, 0, %s28
      %s31 = sadd.s32 1, %s22
      %s32 = scalar_select %p29, %s31, %s22
      %p33 = scmp.ge.s32.totalorder %s32, 2
      %s34 = scalar_select %p33, 0, %s32
      %s35 = ssub.s32 %s22, %s34
      %s36 = ssub.s32 %s23, %s30
      %s37 = sor.u32 %s35, %s36
      %p38 = scmp.eq.s32.totalorder %s37, 0
      %s40 = sadd.s32 %s39, 1
      %s41 = scalar_select %p38, %s39, %s40
      %p44 = pneg %p38
      %p45 = scmp.eq.s32.totalorder %s15, 1
      %p46 = por %p44, %p45
      %p47 = scmp.ne.s32.totalorder %s39, %s42
      %p48 = scmp.eq.s32.totalorder %s15, 0
      %p49 = por %p47, %p48
      %p50 = scmp.ne.s32.totalorder %s39, %s42
      %p51 = scmp.eq.s32.totalorder %s20, 1
      %p52 = por %p50, %p51
      %p53 = scmp.ne.s32.totalorder %s42, %s43
      %p54 = scmp.eq.s32.totalorder %s20, 0
      %p55 = por %p53, %p54
      %p56 = scmp.ne.s32.totalorder %s42, %s43
      %p57 = scmp.eq.s32.totalorder %s21, 1
      %p58 = por %p56, %p57
      %p60 = scmp.ne.s32.totalorder %s43, %s59
      %p61 = scmp.eq.s32.totalorder %s21, 0
      %p62 = por %p60, %p61
      %s63 = ssub.s32 %s22, %s34
      %s64 = ssub.s32 %s23, %s30
      %s65 = sor.u32 %s63, %s64
      %p66 = scmp.eq.s32.totalorder %s65, 0
      %s68 = sadd.s32 %s67, 1
      %s69 = scalar_select %p66, %s67, %s68
      %p72 = pneg %p66
      %p73 = scmp.eq.s32.totalorder %s15, 1
      %p74 = por %p72, %p73
      %p75 = scmp.ne.s32.totalorder %s67, %s70
      %p76 = scmp.eq.s32.totalorder %s15, 0
      %p77 = por %p75, %p76
      %p78 = scmp.ne.s32.totalorder %s67, %s70
      %p79 = scmp.eq.s32.totalorder %s20, 1
      %p80 = por %p78, %p79
      %p81 = scmp.ne.s32.totalorder %s70, %s71
      %p82 = scmp.eq.s32.totalorder %s20, 0
      %p83 = por %p81, %p82
      %p84 = scmp.ne.s32.totalorder %s70, %s71
      %p85 = scmp.eq.s32.totalorder %s21, 1
      %p86 = por %p84, %p85
      %p88 = scmp.ne.s32.totalorder %s71, %s87
      %p89 = scmp.eq.s32.totalorder %s21, 0
      %p90 = por %p88, %p89
      %s92 = sadd.s32 %s91, 1
      %p95 = scmp.eq.s32.totalorder %s15, 1
      %p96 = scmp.ne.s32.totalorder %s91, %s93
      %p97 = scmp.eq.s32.totalorder %s15, 0
      %p98 = por %p96, %p97
      %p99 = scmp.ne.s32.totalorder %s91, %s93
      %p100 = scmp.eq.s32.totalorder %s20, 1
      %p101 = por %p99, %p100
      %p102 = scmp.ne.s32.totalorder %s93, %s94
      %p103 = scmp.eq.s32.totalorder %s20, 0
      %p104 = por %p102, %p103
      %p105 = scmp.ne.s32.totalorder %s93, %s94
      %p106 = scmp.eq.s32.totalorder %s21, 1
      %p107 = por %p105, %p106
      %p109 = scmp.ne.s32.totalorder %s94, %s108
      %p110 = scmp.eq.s32.totalorder %s21, 0
      %p111 = por %p109, %p110
      %s112 = ssub.s32 %s22, %s34
      %s113 = ssub.s32 %s23, %s30
      %s114 = sor.u32 %s112, %s113
      %p115 = scmp.eq.s32.totalorder %s114, 0
      %s117 = sadd.s32 %s116, 1
      %s118 = scalar_select %p115, %s116, %s117
      %p121 = pneg %p115
      %p122 = scmp.eq.s32.totalorder %s15, 1
      %p123 = por %p121, %p122
      %p124 = scmp.ne.s32.totalorder %s116, %s119
      %p125 = scmp.eq.s32.totalorder %s15, 0
      %p126 = por %p124, %p125
      %p127 = scmp.ne.s32.totalorder %s116, %s119
      %p128 = scmp.eq.s32.totalorder %s20, 1
      %p129 = por %p127, %p128
      %p130 = scmp.ne.s32.totalorder %s119, %s120
      %p131 = scmp.eq.s32.totalorder %s20, 0
      %p132 = por %p130, %p131
      %p133 = scmp.ne.s32.totalorder %s119, %s120
      %p134 = scmp.eq.s32.totalorder %s21, 1
      %p135 = por %p133, %p134
      %p137 = scmp.ne.s32.totalorder %s120, %s136
      %p138 = scmp.eq.s32.totalorder %s21, 0
      %p139 = por %p137, %p138
      %p140 = scmp.le.s32.totalorder 1, %s15
      %p141 = scmp.lt.s32.totalorder %s15, 3
      %p142 = pnand %p140, %p141
      %p143 = pneg %p142
      // Predicated region
      $region9: #{tpu_custom_call.1} parent=5 // pred_check
        _
      $region10: #{tpu_custom_call.1} parent=5 // pred_check_branch
        %145 = sbr.rel (%p142) target = $region12
      $region11: #{tpu_custom_call.1} parent=5 // pred_region
        %s146 = ssub.s32 %s15, 1
        // Predicated region
        $region13: #{tpu_custom_call.1} parent=11 // pred_check
          %p147 = pneg %p104
        $region14: #{tpu_custom_call.1} parent=11 // pred_check_branch
          %149 = sbr.rel (%p147) target = $region16
        $region15: #{tpu_custom_call.1} parent=11 // pred_region
          _
        $region16: #{tpu_custom_call.1} parent=11 // pred_fallthru
          _
      $region12: #{tpu_custom_call.1} parent=5 // pred_fallthru
        _
      %p150 = scmp.lt.s32.totalorder %s15, 2
      // Predicated region
      $region17: #{tpu_custom_call.1} parent=5 // pred_check
        %p151 = pneg %p150
      $region18: #{tpu_custom_call.1} parent=5 // pred_check_branch
        %153 = sbr.rel (%p151) target = $region20
      $region19: #{tpu_custom_call.1} parent=5 // pred_region
        // Predicated region
        $region21: #{tpu_custom_call.1} parent=19 // pred_check
          %p154 = pneg %p49
        $region22: #{tpu_custom_call.1} parent=19 // pred_check_branch
          %156 = sbr.rel (%p154) target = $region24
        $region23: #{tpu_custom_call.1} parent=19 // pred_region
          %s157 = sand.u32 %s39, 1
          %s158 = scalar_lea.sflag [#allocation3], %s157
          %s159 = sand.u32 %s39, 1
          %s160 = smul.addr %s159, 8
          %s161 = scalar_lea.vmem [#allocation2], %s160
          %s162 = smul.u32 2, %s23
          %s164 = ssub.s32 128, 128
          %165 = vsyncadd %s158, %s164
          %s166 = smul.addr %s22, 2
          %s167 = sadd.s32 %s162, %s166
          %s168 = smul.addr %s167, 64
          %s169 = scalar_lea.hbm %s0, %s168
          %s171 = sshll.u32 %s161, 4
          %s172 = int_to_ptr.vmem [resolvable:$true] %s171
          %174 = dma.hbm_to_vmem [thread:$0]  %s169, 128, %s172, %s158
        $region24: #{tpu_custom_call.1} parent=19 // pred_fallthru
          _
        // Predicated region
        $region25: #{tpu_custom_call.1} parent=19 // pred_check
          %p175 = pneg %p77
        $region26: #{tpu_custom_call.1} parent=19 // pred_check_branch
          %177 = sbr.rel (%p175) target = $region28
        $region27: #{tpu_custom_call.1} parent=19 // pred_region
          %s178 = smul.u32 2, %s23
          %p179 = scmp.lt.s32.totalorder %s22, 1
          %s180 = scalar_select %p179, %s22, 1
          %p181 = scmp.lt.s32.totalorder %s178, 1
          %s182 = scalar_select %p181, %s178, 1
          %s183 = smul.addr %s180, 2
          %s184 = sadd.s32 %s182, %s183
          %s185 = scalar_lea.vmem %s1, %s184
          %s186 = smul.u32 2, %s23
        $region28: #{tpu_custom_call.1} parent=19 // pred_fallthru
          _
      $region20: #{tpu_custom_call.1} parent=5 // pred_fallthru
        _
      %p187 = scmp.le.s32.totalorder 1, %s15
      %p188 = scmp.lt.s32.totalorder %s15, 3
      %p189 = pnand %p187, %p188
      %p190 = pneg %p189
      // Predicated region
      $region29: #{tpu_custom_call.1} parent=5 // pred_check
        _
      $region30: #{tpu_custom_call.1} parent=5 // pred_check_branch
        %192 = sbr.rel (%p189) target = $region32
      $region31: #{tpu_custom_call.1} parent=5 // pred_region
        %s193 = ssub.s32 %s15, 1
        %s194 = sand.u32 %s42, 1
        %s195 = scalar_lea.sflag [#allocation3], %s194
        %s196 = sand.u32 %s42, 1
        %s197 = smul.addr %s196, 8
        %s198 = scalar_lea.vmem [#allocation2], %s197
        // Predicated region
        $region33: #{tpu_custom_call.1} parent=31 // pred_check
          %p199 = pneg %p55
        $region34: #{tpu_custom_call.1} parent=31 // pred_check_branch
          %201 = sbr.rel (%p199) target = $region36
        $region35: #{tpu_custom_call.1} parent=31 // pred_region
          %202 = dma.done %s195, 128
        $region36: #{tpu_custom_call.1} parent=31 // pred_fallthru
          _
        %s203 = sand.u32 %s42, 1
        %s204 = scalar_lea.sflag [#allocation3], %s203
        %s205 = sand.u32 %s42, 1
        %s206 = smul.addr %s205, 8
        %s207 = scalar_lea.vmem [#allocation2], %s206
        %p208 = pneg %p55
        %p209 = pneg %p52
        %s210 = smul.u32 2, %s25
        %p211 = scmp.lt.s32.totalorder %s24, 1
        %s212 = scalar_select %p211, %s24, 1
        %p213 = scmp.lt.s32.totalorder %s210, 1
        %s214 = scalar_select %p213, %s210, 1
        %s215 = smul.addr %s212, 2
        %s216 = sadd.s32 %s214, %s215
        %s217 = scalar_lea.vmem %s1, %s216
        %p218 = pneg %p83
        %p219 = pneg %p80
        %p220 = pneg %p104
        %p221 = pneg %p101
        %p222 = pneg %p132
        %p223 = pneg %p129
        %s224 = sand.u32 %s119, 1
        %s225 = scalar_lea.sflag [#allocation4], %s224
        %s226 = sand.u32 %s119, 1
        %s227 = smul.addr %s226, 2
        %s228 = scalar_lea.vmem [#allocation5], %s227
        %s229 = smul.u32 2, %s25
        %s230 = smul.u32 2, %s25
        %p231 = scmp.lt.s32.totalorder %s24, 1
        %s232 = scalar_select %p231, %s24, 1
        %p233 = scmp.lt.s32.totalorder %s230, 1
        %s234 = scalar_select %p233, %s230, 1
        %s235 = smul.addr %s232, 2
        %s236 = sadd.s32 %s234, %s235
        %s237 = scalar_lea.vmem %s1, %s236
        %s238 = smul.u32 2, %s25
        %s239 = smul.u32 2, %s25
        %v240 = vld [vmem:[%s198] sm:$0xff]
        %v241 = vld [vmem:[%s237] sm:$0x3]
        %v242 = vld [vmem:[%s2] sm:$0xf]
        %v244 = vcombine.high %v240, %v240
        %vm246 = vcmask 1043456
        %v247 = vsel %vm246, %v240, -inf
        %v248 = vrot.slane %v247, 4
        %v249 = vmax.f32 %v247, %v248
        %v250 = vrot.slane %v249, 2
        %v251 = vmax.f32 %v249, %v250
        %v252 = vrot.slane %v251, 1
        %v253 = vmax.f32 %v251, %v252
        %v254 = vsel %vm246, %v244, -inf
        %v255 = vrot.slane %v254, 4
        %v256 = vmax.f32 %v254, %v255
        %v257 = vrot.slane %v256, 2
        %v258 = vmax.f32 %v256, %v257
        %v259 = vrot.slane %v258, 1
        %v260 = vmax.f32 %v258, %v259
        %v263 = vcombine.low %v253, %v260
        %v265 = vsub.f32 %v240, %v263
        %v266 = vmul.f32 %v265, 1.442695
        %v267 = vpow.pop %v266
        %v269 = vcombine.high %v267, %v267
        %v271 = vsel %vm246, %v267, 0.0
        %v272 = vrot.slane %v271, 4
        %v273 = vadd.f32 %v271, %v272
        %v274 = vrot.slane %v273, 2
        %v275 = vadd.f32 %v273, %v274
        %v276 = vrot.slane %v275, 1
        %v277 = vadd.f32 %v275, %v276
        %v278 = vsel %vm246, %v269, 0.0
        %v279 = vrot.slane %v278, 4
        %v280 = vadd.f32 %v278, %v279
        %v281 = vrot.slane %v280, 2
        %v282 = vadd.f32 %v280, %v281
        %v283 = vrot.slane %v282, 1
        %v284 = vadd.f32 %v282, %v283
        %v285 = vlog2.pop %v277
        %v286 = vmul.f32 %v285, 0.6931472
        %v287 = vlog2.pop %v284
        %v288 = vmul.f32 %v287, 0.6931472
        %v289 = vlaneseq
        %v290 = vshrl.u32 %v289, 7
        %v291 = vlaneseq
        %v292 = vshrl.u32 %v291, 7
        %v293 = vsub.s32 0, %v292
        %v294 = vrot.slane %v241, %v293
        %v295 = vlaneseq
        %v296 = vshrl.u32 %v295, 7
        %v297 = vsub.s32 1, %v296
        %v298 = vrot.slane %v241, %v297
        %vm299 = vcmp.eq.s32.totalorder %v290, %v294
        %vm300 = vcmp.eq.s32.totalorder %v290, %v298
        %v301 = vsel %vm299, 1, 0
        %v302 = vsel %vm300, 1, 0
        %v303 = vcvt.s32.f32 %v301
        %v304 = vcvt.s32.f32 %v302
        %v307 = vcombine.low %v303, %v304
        %v309 = vmul.f32 %v265, %v307
        %v311 = vcombine.high %v309, %v309
        %v313 = vsel %vm246, %v309, 0.0
        %v314 = vrot.slane %v313, 4
        %v315 = vadd.f32 %v313, %v314
        %v316 = vrot.slane %v315, 2
        %v317 = vadd.f32 %v315, %v316
        %v318 = vrot.slane %v317, 1
        %v319 = vadd.f32 %v317, %v318
        %v320 = vsel %vm246, %v311, 0.0
        %v321 = vrot.slane %v320, 4
        %v322 = vadd.f32 %v320, %v321
        %v323 = vrot.slane %v322, 2
        %v324 = vadd.f32 %v322, %v323
        %v325 = vrot.slane %v324, 1
        %v326 = vadd.f32 %v324, %v325
        %v327 = vsub.f32 %v319, %v286
        %v328 = vsub.f32 %v326, %v288
        %v329 = vmul.f32 %v327, 1.442695
        %v330 = vpow.pop %v329
        %v331 = vmul.f32 %v328, 1.442695
        %v332 = vpow.pop %v331
        %334 = vset.pattern.permute.xlu0 0
        %335 = vperm.xlu0 %334, %v242
        %v336 = vpop.permute.xlu0 %335
        %v338 = vmul.f32 %v336, %v303
        %v339 = vmul.f32 %v336, %v304
        %v340 = vsel %vm246, %v338, 0.0
        %v341 = vrot.slane %v340, 4
        %v342 = vadd.f32 %v340, %v341
        %v343 = vrot.slane %v342, 2
        %v344 = vadd.f32 %v342, %v343
        %v345 = vrot.slane %v344, 1
        %v346 = vadd.f32 %v344, %v345
        %v347 = vsel %vm246, %v339, 0.0
        %v348 = vrot.slane %v347, 4
        %v349 = vadd.f32 %v347, %v348
        %v350 = vrot.slane %v349, 2
        %v351 = vadd.f32 %v349, %v350
        %v352 = vrot.slane %v351, 1
        %v353 = vadd.f32 %v351, %v352
        %v354 = vmul.f32 %v327, %v346
        %v355 = vmul.f32 %v328, %v353
        %v356 = vsub.f32 1.0, %v330
        %v357 = vsub.f32 1.0, %v332
        %v358 = vmul.f32 %v356, %v356
        %v359 = vmul.f32 %v357, %v357
        %v360 = vsub.f32 0.0, %v358
        %v361 = vsub.f32 0.0, %v359
        %v362 = vmul.f32 %v360, %v354
        %v363 = vmul.f32 %v361, %v355
        %v366 = vcombine.low %v362, %v363
        %v368 = vunpack.c.l.s4 1966171168
        %v369 = vunpack.c.0.s8 %v368
        %v370 = vlaneseq
        %v371 = vshrl.u32 %v370, 7
        %v372 = vsub.s32 %v369, %v371
        %v373 = vrot.slane %v366, %v372
        %v375 = vunpack.c.l.s4 1966171168
        %v376 = vunpack.c.0.s8 %v375
        %v377 = vlaneseq
        %v378 = vshrl.u32 %v377, 7
        %v379 = vsub.s32 %v376, %v378
        %v380 = vrot.slane %v373, %v379
        %v382 = vlaneseq
        %vm383 = vcmp.ge.s32.totalorder %v382, 0
        %vm384 = vcmp.lt.s32.totalorder %v382, 256
        %vm385 = vmand %vm383, %vm384
        %386 = vst.msk [vmem:[%s228] sm:$0x3] %vm385, %v380
        %s387 = sand.u32 %s119, 1
        %s388 = scalar_lea.sflag [#allocation4], %s387
        %s389 = sand.u32 %s119, 1
        %s390 = smul.addr %s389, 2
        %s391 = scalar_lea.vmem [#allocation5], %s390
        // Predicated region
        $region37: #{tpu_custom_call.1} parent=31 // pred_check
          %p392 = pneg %p129
        $region38: #{tpu_custom_call.1} parent=31 // pred_check_branch
          %394 = sbr.rel (%p392) target = $region40
        $region39: #{tpu_custom_call.1} parent=31 // pred_region
          %s395 = smul.u32 2, %s25
          %s397 = ssub.s32 32, 32
          %398 = vsyncadd %s388, %s397
          %s399 = smul.addr %s24, 2
          %s400 = sadd.s32 %s395, %s399
          %s401 = smul.addr %s400, 16
          %s402 = scalar_lea.hbm %s3, %s401
          %s404 = sshll.u32 %s391, 4
          %s405 = int_to_ptr.vmem [resolvable:$true] %s404
          %407 = dma.vmem_to_hbm [thread:$0]  %s405, 32, %s402, %s388
        $region40: #{tpu_custom_call.1} parent=31 // pred_fallthru
          _
      $region32: #{tpu_custom_call.1} parent=5 // pred_fallthru
        _
      %p408 = scmp.le.s32.totalorder 2, %s15
      // Predicated region
      $region41: #{tpu_custom_call.1} parent=5 // pred_check
        %p409 = pneg %p408
      $region42: #{tpu_custom_call.1} parent=5 // pred_check_branch
        %411 = sbr.rel (%p409) target = $region44
      $region43: #{tpu_custom_call.1} parent=5 // pred_region
        %s412 = ssub.s32 %s15, 2
        // Predicated region
        $region45: #{tpu_custom_call.1} parent=43 // pred_check
          %p413 = pneg %p135
        $region46: #{tpu_custom_call.1} parent=43 // pred_check_branch
          %415 = sbr.rel (%p413) target = $region48
        $region47: #{tpu_custom_call.1} parent=43 // pred_region
          %s416 = sand.u32 %s120, 1
          %s417 = scalar_lea.sflag [#allocation4], %s416
          %s418 = sand.u32 %s120, 1
          %s419 = smul.addr %s418, 2
          %s420 = scalar_lea.vmem [#allocation5], %s419
          %421 = dma.done %s417, 32
        $region48: #{tpu_custom_call.1} parent=43 // pred_fallthru
          _
      $region44: #{tpu_custom_call.1} parent=5 // pred_fallthru
        _
    $region6: #{tpu_custom_call.1} parent=1 // loop_footer
      %s19 = sadd.s32 1, %s15
    $region7: #{tpu_custom_call.1} parent=1 // loop_footer_branch
      %14 = sbr.rel target = $region3
    $region8: #{tpu_custom_call.1} parent=1 // loop_exit
      _
    %422 = vsyncpa [#allocation3], 1
    %s423 = scalar_lea.sflag [#allocation3], 1
    %424 = vsyncpa %s423, 1
    %425 = vsyncpa [#allocation4], 1
    %s426 = scalar_lea.sflag [#allocation4], 1
    %427 = vsyncpa %s426, 1

</llo_original>
